<compile_context>
chip_gen: v5e
topology: v5e:2x2
jax: 0.10.0
libtpu: 0.0.40
codegen_flags: <defaults>
</compile_context>

<pallas_src>
import jax
import jax.numpy as jnp
from jax.experimental import pallas as pl
from jax.experimental.pallas import tpu as pltpu

# Module hyper-parameters (from WeightedDiceBCE.__init__).
DICE_WEIGHTS = (0.5, 0.5)   # WeightedDiceLoss(weights=[0.5, 0.5])
BCE_WEIGHTS = (0.5, 0.5)    # WeightedBCE(weights=[0.5, 0.5])
DICE_SCALE = 1.0            # dice_weight
BCE_SCALE = 1.0             # BCE_weight
DICE_SMOOTH = 1e-5
BCE_EPS = 1e-12
LOG_CLAMP = -100.0          # torch F.binary_cross_entropy clamps log terms at -100

TARGET_TILE_BYTES = 4 << 20        # ~4 MiB per-input tile per grid step
VMEM_LIMIT_BYTES = 48 * 1024 * 1024
LANES = 128
SUBLANES = 8


def _round_up(x, m):
    return (x + m - 1) // m * m


def _default_num_cores():
    """Best-effort TensorCore count; 1 on single-TC chips (v5e/v6e) removes the
    guard path and its duplicated clamped-tile DMA entirely."""
    try:
        dev = jax.devices()[0]
        if dev.platform != "tpu":
            return 1
        kind = str(getattr(dev, "device_kind", "")).lower()
        if ("v4" in kind) or ("v5p" in kind) or ("v7" in kind):
            return 2
    except Exception:
        return 1
    return 1


def _dice_partials(p, t):
    """Per-element dice intersection / union terms (w folded out when weights equal)."""
    if DICE_WEIGHTS[0] == DICE_WEIGHTS[1]:
        # w is constant -> fold w^2 into the finalize scale (no per-element weighting).
        return p * t, p * p + t * t
    w = t * (DICE_WEIGHTS[1] - DICE_WEIGHTS[0]) + DICE_WEIGHTS[0]
    pw = w * p
    tw = w * t
    return pw * tw, pw * pw + tw * tw


def _bce_partials(p, t, hard_labels):
    """Raw (un-negated, un-normalised) BCE accumulands.

    soft: (pos, neg, pos*bce_raw, neg*bce_raw) with bce_raw = t*log p + (1-t)*log(1-p)
    hard: (t, t*log p, (1-t)*log(1-p)) -- neg count derived in the finalize.
    """
    lp = jnp.maximum(jnp.log(p), LOG_CLAMP)
    lq = jnp.maximum(jnp.log(1.0 - p), LOG_CLAMP)
    one_m_t = 1.0 - t
    if hard_labels:
        return (t, t * lp, one_m_t * lq)
    bce_raw = t * lp + one_m_t * lq
    pos = (t > 0.5).astype(jnp.float32)
    neg = (t < 0.5).astype(jnp.float32)
    return (pos, neg, pos * bce_raw, neg * bce_raw)


def _raw_stats_jnp(p, t, hard_labels):
    """Plain-jnp version of the kernel's raw accumulands (for the ragged tail)."""
    B = p.shape[0]
    p = p.reshape(B, -1).astype(jnp.float32)
    t = t.reshape(B, -1).astype(jnp.float32)
    inter_c, union_c = _dice_partials(p, t)
    stats_c = _bce_partials(p, t, hard_labels)
    return (inter_c.sum(axis=-1), union_c.sum(axis=-1),
            jnp.stack([x.sum() for x in stats_c]))


def _make_kernel(B, tr, tiles_per_core, num_tiles, needs_guard, hard_labels):
    """Tiled streaming-accumulation kernel (all sizes are static Python ints)."""
    chunked = tr % SUBLANES == 0
    chunks = tr // SUBLANES if chunked else 0

    def _accumulate(p_ref, t_ref, inter_ref, union_ref, bce_ref):
        # Inputs stream at their native dtype; cast to f32 after load.
        p = p_ref[...].astype(jnp.float32)   # (B, tr, 128)
        t = t_ref[...].astype(jnp.float32)

        inter_c, union_c = _dice_partials(p, t)
        stats_c = _bce_partials(p, t, hard_labels)

        if chunked:
            # VALU-only partial sums into (..., 8, 128) vregs; the cross-lane
            # (XLU) reduce is deferred to the wrapper finalize.
            def per_batch(x):      # (B, tr, 128) -> (B, 8, 128)
                return x.reshape(B, chunks, SUBLANES, LANES).sum(axis=1)

            def global_sum(x):     # (B, tr, 128) -> (8, 128)
                return x.reshape(B, chunks, SUBLANES, LANES).sum(axis=(0, 1))

            inter_ref[0] += per_batch(inter_c)
            union_ref[0] += per_batch(union_c)
            for idx, x in enumerate(stats_c):
                bce_ref[0, idx] += global_sum(x)
        else:
            # Tiny single-tile case (rows < 8): accumulators keep the row dim.
            inter_ref[0] += inter_c
            union_ref[0] += union_c
            for idx, x in enumerate(stats_c):
                bce_ref[0, idx] += x.sum(axis=0)

    def kernel(p_ref, t_ref, inter_ref, union_ref, bce_ref):
        c = pl.program_id(0)
        j = pl.program_id(1)

        @pl.when(j == 0)
        def _init():
            inter_ref[...] = jnp.zeros_like(inter_ref)
            union_ref[...] = jnp.zeros_like(union_ref)
            bce_ref[...] = jnp.zeros_like(bce_ref)

        if needs_guard:
            # The multi-core split over-covers the tile range; skip extra steps.
            @pl.when(c * tiles_per_core + j < num_tiles)
            def _():
                _accumulate(p_ref, t_ref, inter_ref, union_ref, bce_ref)
        else:
            _accumulate(p_ref, t_ref, inter_ref, union_ref, bce_ref)

    return kernel


def weighted_dice_bce(inputs, targets, hard_labels=False, num_cores=None,
                      tile_rows=None):
    """Forward pass of WeightedDiceBCE.

    inputs: probabilities in (0, 1); targets: same shape.
    hard_labels=True uses a cheaper BCE path that is exact only for 0/1 targets.
    num_cores / tile_rows: optional overrides (testing / tuning).
    """
    assert inputs.shape == targets.shape
    B = inputs.shape[0]
    N = 1
    for d in inputs.shape[1:]:
        N *= d

    # Keep native dtype through the pallas_call (cast to f32 in-kernel).
    p2d = inputs.reshape(B, N)
    t2d = targets.reshape(B, N)

    # Lane alignment.  Common case N % 128 == 0: free reshape, no copy.
    n_pad = _round_up(N, LANES)
    pad = n_pad - N
    if pad:
        # TODO(synk): rare unaligned fallback materialises a padded copy; the pad
        # elements only pollute the neg count, which is corrected in the finalize.
        p2d = jnp.pad(p2d, ((0, 0), (0, pad)))
        t2d = jnp.pad(t2d, ((0, 0), (0, pad)))
    rows = n_pad // LANES
    p3 = p2d.reshape(B, rows, LANES)
    t3 = t2d.reshape(B, rows, LANES)

    itemsize = jnp.dtype(inputs.dtype).itemsize
    row_gran = SUBLANES * max(1, 4 // itemsize)   # sublane granularity for packed dtypes

    # Tile rows: multiple of row_gran, sized so each per-input tile is ~4 MiB.
    tr_cap = max(row_gran,
                 (TARGET_TILE_BYTES // (B * LANES * itemsize)) // row_gran * row_gran)
    if tile_rows is not None:
        tr_cap = max(row_gran, tile_rows // row_gran * row_gran)

    if rows < row_gran:
        tr, num_tiles, tail_rows = rows, 1, 0            # tiny single-tile case
    else:
        tr = min(tr_cap, rows // row_gran * row_gran)
        num_tiles = rows // tr
        tail_rows = rows - num_tiles * tr                # ragged tail -> jnp finalize

    if num_cores is None:
        num_cores = _default_num_cores()
    num_cores = max(1, min(num_cores, num_tiles))
    tiles_per_core = _round_up(num_tiles, num_cores) // num_cores
    needs_guard = num_cores * tiles_per_core != num_tiles

    if needs_guard:
        def in_map(c, j):
            # Clamp so the block DMA stays in-bounds; the kernel guard skips compute.
            return (0, jnp.minimum(c * tiles_per_core + j, num_tiles - 1), 0)
    else:
        def in_map(c, j):
            return (0, c * tiles_per_core + j, 0)

    acc_rows = SUBLANES if tr % SUBLANES == 0 else tr
    n_stats = 3 if hard_labels else 4
    kernel = _make_kernel(B, tr, tiles_per_core, num_tiles, needs_guard, hard_labels)

    inter_p, union_p, bce_p = pl.pallas_call(
        kernel,
        out_shape=(
            jax.ShapeDtypeStruct((num_cores, B, acc_rows, LANES), jnp.float32),
            jax.ShapeDtypeStruct((num_cores, B, acc_rows, LANES), jnp.float32),
            jax.ShapeDtypeStruct((num_cores, n_stats, acc_rows, LANES), jnp.float32),
        ),
        grid=(num_cores, tiles_per_core),
        in_specs=[
            pl.BlockSpec((B, tr, LANES), in_map),
            pl.BlockSpec((B, tr, LANES), in_map),
        ],
        out_specs=(
            pl.BlockSpec((1, B, acc_rows, LANES), lambda c, j: (c, 0, 0, 0)),
            pl.BlockSpec((1, B, acc_rows, LANES), lambda c, j: (c, 0, 0, 0)),
            pl.BlockSpec((1, n_stats, acc_rows, LANES), lambda c, j: (c, 0, 0, 0)),
        ),
        compiler_params=pltpu.CompilerParams(
            # TODO(synk): on v7x verify the leading axis really shards across both
            # TensorCores; switch it to pltpu.CORE_PARALLEL if it runs serially.
            dimension_semantics=("parallel", "arbitrary"),
            vmem_limit_bytes=VMEM_LIMIT_BYTES,
        ),
    )(p3, t3)

    # ---- Tiny finalize (a few vregs / scalars) in plain JAX -----------------
    inter_raw = jnp.sum(inter_p, axis=(0, 2, 3))             # (B,)
    union_raw = jnp.sum(union_p, axis=(0, 2, 3))             # (B,)
    stats_raw = jnp.sum(bce_p, axis=(0, 2, 3))               # (n_stats,)

    if tail_rows:
        main_rows = num_tiles * tr
        ti, tu, ts = _raw_stats_jnp(p3[:, main_rows:, :], t3[:, main_rows:, :],
                                    hard_labels)
        inter_raw = inter_raw + ti
        union_raw = union_raw + tu
        stats_raw = stats_raw + ts

    dice_fold = DICE_WEIGHTS[0] ** 2 if DICE_WEIGHTS[0] == DICE_WEIGHTS[1] else 1.0
    inter = dice_fold * inter_raw
    union = dice_fold * union_raw
    dice = 1.0 - (2.0 * inter + DICE_SMOOTH) / (union + DICE_SMOOTH)
    dice_loss = jnp.mean(dice)

    total_valid = float(B * N)
    if hard_labels:
        pos_cnt = stats_raw[0]
        neg_cnt = total_valid - pos_cnt          # exact for hard 0/1 targets
        pos_bce = -stats_raw[1]
        neg_bce = -stats_raw[2]
    else:
        pos_cnt = stats_raw[0]
        neg_cnt = stats_raw[1] - float(B * pad)  # remove zero-pad neg pollution
        pos_bce = -stats_raw[2]
        neg_bce = -stats_raw[3]

    bce_loss = (BCE_WEIGHTS[0] * pos_bce / (pos_cnt + BCE_EPS)
                + BCE_WEIGHTS[1] * neg_bce / (neg_cnt + BCE_EPS))

    return DICE_SCALE * dice_loss + BCE_SCALE * bce_loss


def _reference(inputs, targets):
    """Pure-JAX reference mirroring the PyTorch module."""
    B = inputs.shape[0]
    p = inputs.reshape(B, -1).astype(jnp.float32)
    t = targets.reshape(B, -1).astype(jnp.float32)

    w = t * (DICE_WEIGHTS[1] - DICE_WEIGHTS[0]) + DICE_WEIGHTS[0]
    pw, tw = w * p, w * t
    inter = jnp.sum(pw * tw, -1)
    union = jnp.sum(pw * pw, -1) + jnp.sum(tw * tw, -1)
    dice = jnp.mean(1.0 - (2.0 * inter + DICE_SMOOTH) / (union + DICE_SMOOTH))

    pf, tf = p.reshape(-1), t.reshape(-1)
    bce = -(tf * jnp.maximum(jnp.log(pf), LOG_CLAMP)
            + (1.0 - tf) * jnp.maximum(jnp.log(1.0 - pf), LOG_CLAMP))
    pos = (tf > 0.5).astype(jnp.float32)
    neg = (tf < 0.5).astype(jnp.float32)
    bce_loss = jnp.sum(
        BCE_WEIGHTS[0] * pos * bce / (jnp.sum(pos) + BCE_EPS)
        + BCE_WEIGHTS[1] * neg * bce / (jnp.sum(neg) + BCE_EPS))
    return DICE_SCALE * dice + BCE_SCALE * bce_loss


if __name__ == "__main__":
    key = jax.random.PRNGKey(0)
    k1, k2 = jax.random.split(key)

    def _check(got, want, tag):
        assert jnp.allclose(got, want, rtol=1e-4, atol=1e-5), (tag, got, want)

    # 1) Aligned shape (N = 1024 -> 8 rows, single tile, no pad, no tail).
    B, C, H, W = 2, 4, 16, 16
    inputs = jax.nn.sigmoid(jax.random.normal(k1, (B, C, H, W), dtype=jnp.float32))
    targets = jax.random.bernoulli(k2, 0.3, (B, C, H, W)).astype(jnp.float32)
    loss = jax.block_until_ready(weighted_dice_bce(inputs, targets))
    ref = jax.block_until_ready(_reference(inputs, targets))
    _check(loss, ref, "aligned")

    # 1b) Hard-label fast path (5 accumulators, derived neg count).
    loss_hard = jax.block_until_ready(
        weighted_dice_bce(inputs, targets, hard_labels=True))
    _check(loss_hard, ref, "hard_labels")

    # 2) Multi-tile with a ragged jnp tail (80 rows, 32-row tiles -> 2 tiles + 16 tail).
    inp2 = jax.nn.sigmoid(jax.random.normal(k1, (2, 4, 40, 64), dtype=jnp.float32))
    tgt2 = jax.random.bernoulli(k2, 0.4, (2, 4, 40, 64)).astype(jnp.float32)
    ref2 = jax.block_until_ready(_reference(inp2, tgt2))
    loss2 = jax.block_until_ready(weighted_dice_bce(inp2, tgt2, tile_rows=32))
    _check(loss2, ref2, "tail")

    # 2b) Forced 2-core split with an odd tile count (exercises the guard path).
    loss2b = jax.block_until_ready(
        weighted_dice_bce(inp2, tgt2, tile_rows=16, num_cores=2))
    _check(loss2b, ref2, "guard")

    # 3) Unaligned shape (N = 300 -> pad fallback + tiny single-tile path).
    inp3 = jax.nn.sigmoid(jax.random.normal(k1, (2, 3, 10, 10), dtype=jnp.float32))
    tgt3 = jax.random.bernoulli(k2, 0.4, (2, 3, 10, 10)).astype(jnp.float32)
    loss3 = jax.block_until_ready(weighted_dice_bce(inp3, tgt3))
    ref3 = jax.block_until_ready(_reference(inp3, tgt3))
    _check(loss3, ref3, "unaligned")

    print("KERNEL_OK")
</pallas_src>

<mosaic_0001>
module attributes {stable_mosaic.version = 11 : i64} {
  func.func @kernel(%arg0: i32, %arg1: i32, %arg2: memref<2x8x128xf32, #tpu.memory_space<vmem>>, %arg3: memref<2x8x128xf32, #tpu.memory_space<vmem>>, %arg4: memref<1x2x8x128xf32, #tpu.memory_space<vmem>>, %arg5: memref<1x2x8x128xf32, #tpu.memory_space<vmem>>, %arg6: memref<1x4x8x128xf32, #tpu.memory_space<vmem>>) attributes {dimension_semantics = [#tpu.dimension_semantics<parallel>, #tpu.dimension_semantics<arbitrary>], iteration_bounds = array<i64: 1, 1>, scalar_prefetch = 0 : i64, scratch_operands = 0 : i64, tpu.core_type = #tpu.core_type<tc>, window_params = [{transform_indices = @transform_0, window_bounds = array<i64: 2, 8, 128>}, {transform_indices = @transform_1, window_bounds = array<i64: 2, 8, 128>}, {transform_indices = @transform_2, window_bounds = array<i64: 1, 2, 8, 128>}, {transform_indices = @transform_3, window_bounds = array<i64: 1, 2, 8, 128>}, {transform_indices = @transform_4, window_bounds = array<i64: 1, 4, 8, 128>}]} {
    %c0_i32 = arith.constant 0 : i32
    %0 = arith.cmpi eq, %arg1, %c0_i32 : i32
    %1 = arith.extui %0 : i1 to i32
    %c0_i32_0 = arith.constant 0 : i32
    %2 = arith.cmpi ne, %1, %c0_i32_0 : i32
    scf.if %2 {
      %cst_62 = arith.constant 0.000000e+00 : f32
      %80 = vector.broadcast %cst_62 : f32 to vector<1x2x8x128xf32>
      %c0_63 = arith.constant 0 : index
      %c0_64 = arith.constant 0 : index
      %c0_65 = arith.constant 0 : index
      %c0_66 = arith.constant 0 : index
      %81 = vector.load %arg4[%c0_63, %c0_64, %c0_65, %c0_66] : memref<1x2x8x128xf32, #tpu.memory_space<vmem>>, vector<1x2x8x128xf32>
      tpu.vector_store %arg4[%c0_63, %c0_64, %c0_65, %c0_66], %80 {strides = array<i32>} : memref<1x2x8x128xf32, #tpu.memory_space<vmem>>, vector<1x2x8x128xf32>,
      %cst_67 = arith.constant 0.000000e+00 : f32
      %82 = vector.broadcast %cst_67 : f32 to vector<1x2x8x128xf32>
      %c0_68 = arith.constant 0 : index
      %c0_69 = arith.constant 0 : index
      %c0_70 = arith.constant 0 : index
      %c0_71 = arith.constant 0 : index
      %83 = vector.load %arg5[%c0_68, %c0_69, %c0_70, %c0_71] : memref<1x2x8x128xf32, #tpu.memory_space<vmem>>, vector<1x2x8x128xf32>
      tpu.vector_store %arg5[%c0_68, %c0_69, %c0_70, %c0_71], %82 {strides = array<i32>} : memref<1x2x8x128xf32, #tpu.memory_space<vmem>>, vector<1x2x8x128xf32>,
      %cst_72 = arith.constant 0.000000e+00 : f32
      %84 = vector.broadcast %cst_72 : f32 to vector<1x4x8x128xf32>
      %c0_73 = arith.constant 0 : index
      %c0_74 = arith.constant 0 : index
      %c0_75 = arith.constant 0 : index
      %c0_76 = arith.constant 0 : index
      %85 = vector.load %arg6[%c0_73, %c0_74, %c0_75, %c0_76] : memref<1x4x8x128xf32, #tpu.memory_space<vmem>>, vector<1x4x8x128xf32>
      tpu.vector_store %arg6[%c0_73, %c0_74, %c0_75, %c0_76], %84 {strides = array<i32>} : memref<1x4x8x128xf32, #tpu.memory_space<vmem>>, vector<1x4x8x128xf32>,
    } else {
    }
    %c0 = arith.constant 0 : index
    %c0_1 = arith.constant 0 : index
    %c0_2 = arith.constant 0 : index
    %3 = vector.load %arg2[%c0, %c0_1, %c0_2] : memref<2x8x128xf32, #tpu.memory_space<vmem>>, vector<2x8x128xf32>
    %c0_3 = arith.constant 0 : index
    %c0_4 = arith.constant 0 : index
    %c0_5 = arith.constant 0 : index
    %4 = vector.load %arg3[%c0_3, %c0_4, %c0_5] : memref<2x8x128xf32, #tpu.memory_space<vmem>>, vector<2x8x128xf32>
    %5 = arith.mulf %3, %4 : vector<2x8x128xf32>
    %6 = arith.mulf %3, %3 : vector<2x8x128xf32>
    %7 = arith.mulf %4, %4 : vector<2x8x128xf32>
    %8 = arith.addf %6, %7 : vector<2x8x128xf32>
    %9 = math.log %3 : vector<2x8x128xf32>
    %cst = arith.constant -1.000000e+02 : f32
    %10 = vector.broadcast %cst : f32 to vector<2x8x128xf32>
    %11 = arith.maximumf %9, %10 : vector<2x8x128xf32>
    %cst_6 = arith.constant 1.000000e+00 : f32
    %12 = vector.broadcast %cst_6 : f32 to vector<2x8x128xf32>
    %13 = arith.subf %12, %3 : vector<2x8x128xf32>
    %14 = math.log %13 : vector<2x8x128xf32>
    %cst_7 = arith.constant -1.000000e+02 : f32
    %15 = vector.broadcast %cst_7 : f32 to vector<2x8x128xf32>
    %16 = arith.maximumf %14, %15 : vector<2x8x128xf32>
    %cst_8 = arith.constant 1.000000e+00 : f32
    %17 = vector.broadcast %cst_8 : f32 to vector<2x8x128xf32>
    %18 = arith.subf %17, %4 : vector<2x8x128xf32>
    %19 = arith.mulf %4, %11 : vector<2x8x128xf32>
    %20 = arith.mulf %18, %16 : vector<2x8x128xf32>
    %21 = arith.addf %19, %20 : vector<2x8x128xf32>
    %cst_9 = arith.constant 5.000000e-01 : f32
    %22 = vector.broadcast %cst_9 : f32 to vector<2x8x128xf32>
    %23 = arith.cmpf ogt, %4, %22 : vector<2x8x128xf32>
    %24 = arith.extui %23 : vector<2x8x128xi1> to vector<2x8x128xi32>
    %25 = arith.sitofp %24 : vector<2x8x128xi32> to vector<2x8x128xf32>
    %cst_10 = arith.constant 5.000000e-01 : f32
    %26 = vector.broadcast %cst_10 : f32 to vector<2x8x128xf32>
    %27 = arith.cmpf olt, %4, %26 : vector<2x8x128xf32>
    %28 = arith.extui %27 : vector<2x8x128xi1> to vector<2x8x128xi32>
    %29 = arith.sitofp %28 : vector<2x8x128xi32> to vector<2x8x128xf32>
    %30 = arith.mulf %25, %21 : vector<2x8x128xf32>
    %31 = arith.mulf %29, %21 : vector<2x8x128xf32>
    %c0_11 = arith.constant 0 : index
    %c0_12 = arith.constant 0 : index
    %c0_13 = arith.constant 0 : index
    %c0_14 = arith.constant 0 : index
    %32 = vector.load %arg4[%c0_11, %c0_12, %c0_13, %c0_14] : memref<1x2x8x128xf32, #tpu.memory_space<vmem>>, vector<1x2x8x128xf32>
    %33 = vector.shape_cast %32 : vector<1x2x8x128xf32> to vector<2x8x128xf32>
    %34 = vector.shape_cast %5 : vector<2x8x128xf32> to vector<2x1x8x128xf32>
    %cst_15 = arith.constant dense<0.000000e+00> : vector<2x8x128xf32>
    %35 = vector.multi_reduction <add>, %34, %cst_15 [1] : vector<2x1x8x128xf32> to vector<2x8x128xf32>
    %36 = arith.addf %33, %35 : vector<2x8x128xf32>
    %c0_16 = arith.constant 0 : index
    %c0_17 = arith.constant 0 : index
    %c0_18 = arith.constant 0 : index
    %c0_19 = arith.constant 0 : index
    %37 = vector.load %arg4[%c0_16, %c0_17, %c0_18, %c0_19] : memref<1x2x8x128xf32, #tpu.memory_space<vmem>>, vector<1x2x8x128xf32>
    %38 = vector.shape_cast %37 : vector<1x2x8x128xf32> to vector<2x8x128xf32>
    %39 = vector.shape_cast %36 : vector<2x8x128xf32> to vector<1x2x8x128xf32>
    tpu.vector_store %arg4[%c0_16, %c0_17, %c0_18, %c0_19], %39 {strides = array<i32>} : memref<1x2x8x128xf32, #tpu.memory_space<vmem>>, vector<1x2x8x128xf32>,
    %c0_20 = arith.constant 0 : index
    %c0_21 = arith.constant 0 : index
    %c0_22 = arith.constant 0 : index
    %c0_23 = arith.constant 0 : index
    %40 = vector.load %arg5[%c0_20, %c0_21, %c0_22, %c0_23] : memref<1x2x8x128xf32, #tpu.memory_space<vmem>>, vector<1x2x8x128xf32>
    %41 = vector.shape_cast %40 : vector<1x2x8x128xf32> to vector<2x8x128xf32>
    %42 = vector.shape_cast %8 : vector<2x8x128xf32> to vector<2x1x8x128xf32>
    %cst_24 = arith.constant dense<0.000000e+00> : vector<2x8x128xf32>
    %43 = vector.multi_reduction <add>, %42, %cst_24 [1] : vector<2x1x8x128xf32> to vector<2x8x128xf32>
    %44 = arith.addf %41, %43 : vector<2x8x128xf32>
    %c0_25 = arith.constant 0 : index
    %c0_26 = arith.constant 0 : index
    %c0_27 = arith.constant 0 : index
    %c0_28 = arith.constant 0 : index
    %45 = vector.load %arg5[%c0_25, %c0_26, %c0_27, %c0_28] : memref<1x2x8x128xf32, #tpu.memory_space<vmem>>, vector<1x2x8x128xf32>
    %46 = vector.shape_cast %45 : vector<1x2x8x128xf32> to vector<2x8x128xf32>
    %47 = vector.shape_cast %44 : vector<2x8x128xf32> to vector<1x2x8x128xf32>
    tpu.vector_store %arg5[%c0_25, %c0_26, %c0_27, %c0_28], %47 {strides = array<i32>} : memref<1x2x8x128xf32, #tpu.memory_space<vmem>>, vector<1x2x8x128xf32>,
    %c0_29 = arith.constant 0 : index
    %c0_30 = arith.constant 0 : index
    %c0_31 = arith.constant 0 : index
    %c0_32 = arith.constant 0 : index
    %48 = vector.load %arg6[%c0_29, %c0_30, %c0_31, %c0_32] : memref<1x4x8x128xf32, #tpu.memory_space<vmem>>, vector<1x1x8x128xf32>
    %49 = vector.shape_cast %48 : vector<1x1x8x128xf32> to vector<8x128xf32>
    %50 = vector.shape_cast %25 : vector<2x8x128xf32> to vector<2x1x8x128xf32>
    %cst_33 = arith.constant dense<0.000000e+00> : vector<8x128xf32>
    %51 = vector.multi_reduction <add>, %50, %cst_33 [0, 1] : vector<2x1x8x128xf32> to vector<8x128xf32>
    %52 = arith.addf %49, %51 : vector<8x128xf32>
    %c0_34 = arith.constant 0 : index
    %c0_35 = arith.constant 0 : index
    %c0_36 = arith.constant 0 : index
    %c0_37 = arith.constant 0 : index
    %53 = vector.load %arg6[%c0_34, %c0_35, %c0_36, %c0_37] : memref<1x4x8x128xf32, #tpu.memory_space<vmem>>, vector<1x1x8x128xf32>
    %54 = vector.shape_cast %53 : vector<1x1x8x128xf32> to vector<8x128xf32>
    %55 = vector.shape_cast %52 : vector<8x128xf32> to vector<1x1x8x128xf32>
    tpu.vector_store %arg6[%c0_34, %c0_35, %c0_36, %c0_37], %55 {strides = array<i32>} : memref<1x4x8x128xf32, #tpu.memory_space<vmem>>, vector<1x1x8x128xf32>,
    %c0_38 = arith.constant 0 : index
    %c1 = arith.constant 1 : index
    %c0_39 = arith.constant 0 : index
    %c0_40 = arith.constant 0 : index
    %56 = vector.load %arg6[%c0_38, %c1, %c0_39, %c0_40] : memref<1x4x8x128xf32, #tpu.memory_space<vmem>>, vector<1x1x8x128xf32>
    %57 = vector.shape_cast %56 : vector<1x1x8x128xf32> to vector<8x128xf32>
    %58 = vector.shape_cast %29 : vector<2x8x128xf32> to vector<2x1x8x128xf32>
    %cst_41 = arith.constant dense<0.000000e+00> : vector<8x128xf32>
    %59 = vector.multi_reduction <add>, %58, %cst_41 [0, 1] : vector<2x1x8x128xf32> to vector<8x128xf32>
    %60 = arith.addf %57, %59 : vector<8x128xf32>
    %c0_42 = arith.constant 0 : index
    %c1_43 = arith.constant 1 : index
    %c0_44 = arith.constant 0 : index
    %c0_45 = arith.constant 0 : index
    %61 = vector.load %arg6[%c0_42, %c1_43, %c0_44, %c0_45] : memref<1x4x8x128xf32, #tpu.memory_space<vmem>>, vector<1x1x8x128xf32>
    %62 = vector.shape_cast %61 : vector<1x1x8x128xf32> to vector<8x128xf32>
    %63 = vector.shape_cast %60 : vector<8x128xf32> to vector<1x1x8x128xf32>
    tpu.vector_store %arg6[%c0_42, %c1_43, %c0_44, %c0_45], %63 {strides = array<i32>} : memref<1x4x8x128xf32, #tpu.memory_space<vmem>>, vector<1x1x8x128xf32>,
    %c0_46 = arith.constant 0 : index
    %c2 = arith.constant 2 : index
    %c0_47 = arith.constant 0 : index
    %c0_48 = arith.constant 0 : index
    %64 = vector.load %arg6[%c0_46, %c2, %c0_47, %c0_48] : memref<1x4x8x128xf32, #tpu.memory_space<vmem>>, vector<1x1x8x128xf32>
    %65 = vector.shape_cast %64 : vector<1x1x8x128xf32> to vector<8x128xf32>
    %66 = vector.shape_cast %30 : vector<2x8x128xf32> to vector<2x1x8x128xf32>
    %cst_49 = arith.constant dense<0.000000e+00> : vector<8x128xf32>
    %67 = vector.multi_reduction <add>, %66, %cst_49 [0, 1] : vector<2x1x8x128xf32> to vector<8x128xf32>
    %68 = arith.addf %65, %67 : vector<8x128xf32>
    %c0_50 = arith.constant 0 : index
    %c2_51 = arith.constant 2 : index
    %c0_52 = arith.constant 0 : index
    %c0_53 = arith.constant 0 : index
    %69 = vector.load %arg6[%c0_50, %c2_51, %c0_52, %c0_53] : memref<1x4x8x128xf32, #tpu.memory_space<vmem>>, vector<1x1x8x128xf32>
    %70 = vector.shape_cast %69 : vector<1x1x8x128xf32> to vector<8x128xf32>
    %71 = vector.shape_cast %68 : vector<8x128xf32> to vector<1x1x8x128xf32>
    tpu.vector_store %arg6[%c0_50, %c2_51, %c0_52, %c0_53], %71 {strides = array<i32>} : memref<1x4x8x128xf32, #tpu.memory_space<vmem>>, vector<1x1x8x128xf32>,
    %c0_54 = arith.constant 0 : index
    %c3 = arith.constant 3 : index
    %c0_55 = arith.constant 0 : index
    %c0_56 = arith.constant 0 : index
    %72 = vector.load %arg6[%c0_54, %c3, %c0_55, %c0_56] : memref<1x4x8x128xf32, #tpu.memory_space<vmem>>, vector<1x1x8x128xf32>
    %73 = vector.shape_cast %72 : vector<1x1x8x128xf32> to vector<8x128xf32>
    %74 = vector.shape_cast %31 : vector<2x8x128xf32> to vector<2x1x8x128xf32>
    %cst_57 = arith.constant dense<0.000000e+00> : vector<8x128xf32>
    %75 = vector.multi_reduction <add>, %74, %cst_57 [0, 1] : vector<2x1x8x128xf32> to vector<8x128xf32>
    %76 = arith.addf %73, %75 : vector<8x128xf32>
    %c0_58 = arith.constant 0 : index
    %c3_59 = arith.constant 3 : index
    %c0_60 = arith.constant 0 : index
    %c0_61 = arith.constant 0 : index
    %77 = vector.load %arg6[%c0_58, %c3_59, %c0_60, %c0_61] : memref<1x4x8x128xf32, #tpu.memory_space<vmem>>, vector<1x1x8x128xf32>
    %78 = vector.shape_cast %77 : vector<1x1x8x128xf32> to vector<8x128xf32>
    %79 = vector.shape_cast %76 : vector<8x128xf32> to vector<1x1x8x128xf32>
    tpu.vector_store %arg6[%c0_58, %c3_59, %c0_60, %c0_61], %79 {strides = array<i32>} : memref<1x4x8x128xf32, #tpu.memory_space<vmem>>, vector<1x1x8x128xf32>,
    return
  }
  func.func @transform_0(%arg0: i32, %arg1: i32) -> (i32, i32, i32) {
    %c1_i32 = arith.constant 1 : i32
    %0 = arith.muli %arg0, %c1_i32 : i32
    %1 = arith.addi %0, %arg1 : i32
    %c0_i32 = arith.constant 0 : i32
    %c0_i32_0 = arith.constant 0 : i32
    %c0_i32_1 = arith.constant 0 : i32
    return %c0_i32, %1, %c0_i32_0 : i32, i32, i32
  }
  func.func @transform_1(%arg0: i32, %arg1: i32) -> (i32, i32, i32) {
    %c1_i32 = arith.constant 1 : i32
    %0 = arith.muli %arg0, %c1_i32 : i32
    %1 = arith.addi %0, %arg1 : i32
    %c0_i32 = arith.constant 0 : i32
    %c0_i32_0 = arith.constant 0 : i32
    %c0_i32_1 = arith.constant 0 : i32
    return %c0_i32, %1, %c0_i32_0 : i32, i32, i32
  }
  func.func @transform_2(%arg0: i32, %arg1: i32) -> (i32, i32, i32, i32) {
    %c0_i32 = arith.constant 0 : i32
    %c0_i32_0 = arith.constant 0 : i32
    %c0_i32_1 = arith.constant 0 : i32
    %c0_i32_2 = arith.constant 0 : i32
    return %arg0, %c0_i32, %c0_i32_0, %c0_i32_1 : i32, i32, i32, i32
  }
  func.func @transform_3(%arg0: i32, %arg1: i32) -> (i32, i32, i32, i32) {
    %c0_i32 = arith.constant 0 : i32
    %c0_i32_0 = arith.constant 0 : i32
    %c0_i32_1 = arith.constant 0 : i32
    %c0_i32_2 = arith.constant 0 : i32
    return %arg0, %c0_i32, %c0_i32_0, %c0_i32_1 : i32, i32, i32, i32
  }
  func.func @transform_4(%arg0: i32, %arg1: i32) -> (i32, i32, i32, i32) {
    %c0_i32 = arith.constant 0 : i32
    %c0_i32_0 = arith.constant 0 : i32
    %c0_i32_1 = arith.constant 0 : i32
    %c0_i32_2 = arith.constant 0 : i32
    return %arg0, %c0_i32, %c0_i32_0, %c0_i32_1 : i32, i32, i32, i32
  }
}

</mosaic_0001>

<llo_original>
// kernel: tpu_custom_call.1
$region0: #{tpu_custom_call.1}
  #allocation0 [shape = 'u32[]', space=smem, size = 0x4, offset = 0x4, fixed_abs, tag = 'smem constant byte address 0x4 - core index']
  #allocation1 [shape = 'u32[72,128]{1,0:T(1,128)}', space=vmem, size = 0x9000, scoped, tag = 'internal scratch']
  %s0 = inlined_call_operand.hbm [shape: f32[2,8,128], index: 0, kind: input, shape index: {}]
  %s1 = inlined_call_operand.hbm [shape: f32[2,8,128], index: 1, kind: input, shape index: {}]
  %s2 = inlined_call_operand.hbm [shape: f32[1,2,8,128], index: 2, kind: output, shape index: {0}]
  %s3 = inlined_call_operand.hbm [shape: f32[1,2,8,128], index: 3, kind: output, shape index: {1}]
  %s4 = inlined_call_operand.hbm [shape: f32[1,4,8,128], index: 4, kind: output, shape index: {2}]
  %5 = xla_tuple %s2, %s3, %s4
  %s6 = sld [smem:[#allocation0]]
  $region46: #{tpu_custom_call.1} parent=0
    _
  %s8 = ssub.s32 1, %s6
  %s9 = scalar_select 0, %s8, %s6
  $region1: #{tpu_custom_call.1} parent=0
    #allocation2 [shape = 'u8[8192]{0}', space=vmem, size = 0x2000, scoped, tag = 'input window, operand 0, single buffered']
    #allocation3 [shape = 's32[1]{0}', space=sflag, size = 0x4, scoped, tag = 'scoped memory for tpu_custom_call.1']
    #allocation4 [shape = 's32[1]{0}', space=sflag, size = 0x4, scoped, tag = 'scoped memory for tpu_custom_call.1']
    #allocation5 [shape = 'u8[8192]{0}', space=vmem, size = 0x2000, scoped, tag = 'input window, operand 1, single buffered']
    #allocation6 [shape = 's32[1]{0}', space=sflag, size = 0x4, scoped, tag = 'scoped memory for tpu_custom_call.1']
    #allocation7 [shape = 'u8[8192]{0}', space=vmem, size = 0x2000, scoped, tag = 'output window, operand 0, single buffered']
    #allocation8 [shape = 'u8[8192]{0}', space=vmem, size = 0x2000, scoped, tag = 'output window, operand 1, single buffered']
    #allocation9 [shape = 's32[1]{0}', space=sflag, size = 0x4, scoped, tag = 'scoped memory for tpu_custom_call.1']
    #allocation10 [shape = 'u8[16384]{0}', space=vmem, size = 0x4000, scoped, tag = 'output window, operand 2, single buffered']
    %10 = vsyncpa [#allocation3], 0
    %11 = vsyncpa [#allocation6], 0
    %12 = vsyncpa [#allocation4], 0
    %13 = vsyncpa [#allocation9], 0
    // Predicated region
    $region2: #{tpu_custom_call.1} parent=1 // pred_check
      _
    $region3: #{tpu_custom_call.1} parent=1 // pred_check_branch
      %15 = sbr.rel (0) target = $region5
    $region4: #{tpu_custom_call.1} parent=1 // pred_region
      %s16 = sadd.s32 0, 0
      %18 = vsyncadd [#allocation3], 0
      %s19 = smul.addr %s16, 8
      %s20 = scalar_lea.hbm %s0, %s19
      %s21 = sshll.u32 %s20, 4
      %s22 = int_to_ptr.hbm [resolvable:$true] %s21
      %s23 = sshll.u32 [#allocation2], 4
      %s24 = int_to_ptr.vmem [resolvable:$true] %s23
      %29 = dma.hbm_to_vmem [thread:$0]  %s22, 256, %s24, [#allocation3], 128, 128, 8
    $region5: #{tpu_custom_call.1} parent=1 // pred_fallthru
      _
    // Predicated region
    $region6: #{tpu_custom_call.1} parent=1 // pred_check
      _
    $region7: #{tpu_custom_call.1} parent=1 // pred_check_branch
      %31 = sbr.rel (0) target = $region9
    $region8: #{tpu_custom_call.1} parent=1 // pred_region
      %s32 = sadd.s32 0, 0
      %34 = vsyncadd [#allocation6], 0
      %s35 = smul.addr %s32, 8
      %s36 = scalar_lea.hbm %s1, %s35
      %s37 = sshll.u32 %s36, 4
      %s38 = int_to_ptr.hbm [resolvable:$true] %s37
      %s39 = sshll.u32 [#allocation5], 4
      %s40 = int_to_ptr.vmem [resolvable:$true] %s39
      %45 = dma.hbm_to_vmem [thread:$0]  %s38, 256, %s40, [#allocation6], 128, 128, 8
    $region9: #{tpu_custom_call.1} parent=1 // pred_fallthru
      _
    // Predicated region
    $region10: #{tpu_custom_call.1} parent=1 // pred_check
      _
    $region11: #{tpu_custom_call.1} parent=1 // pred_check_branch
      %47 = sbr.rel (0) target = $region13
    $region12: #{tpu_custom_call.1} parent=1 // pred_region
      %49 = dma.done [#allocation3], 256
    $region13: #{tpu_custom_call.1} parent=1 // pred_fallthru
      _
    // Predicated region
    $region14: #{tpu_custom_call.1} parent=1 // pred_check
      _
    $region15: #{tpu_custom_call.1} parent=1 // pred_check_branch
      %51 = sbr.rel (0) target = $region17
    $region16: #{tpu_custom_call.1} parent=1 // pred_region
      %53 = dma.done [#allocation6], 256
    $region17: #{tpu_custom_call.1} parent=1 // pred_fallthru
      _
    %s54 = sadd.s32 0, 0
    %s55 = sadd.s32 0, 0
    %p56 = scmp.eq.s32.totalorder 0, 0
    // Predicated region
    $region18: #{tpu_custom_call.1} parent=1 // pred_check
      %p57 = pneg %p56
    $region19: #{tpu_custom_call.1} parent=1 // pred_check_branch
      %59 = sbr.rel (%p57) target = $region21
    $region20: #{tpu_custom_call.1} parent=1 // pred_region
      %60 = vst [vmem:[#allocation7] sm:$0xff] 0.0
      %61 = vst [vmem:[#allocation7 + $0x8] sm:$0xff] 0.0
      %62 = vst [vmem:[#allocation8] sm:$0xff] 0.0
      %63 = vst [vmem:[#allocation8 + $0x8] sm:$0xff] 0.0
      %64 = vst [vmem:[#allocation10] sm:$0xff] 0.0
      %65 = vst [vmem:[#allocation10 + $0x8] sm:$0xff] 0.0
      %66 = vst [vmem:[#allocation10 + $0x10] sm:$0xff] 0.0
      %67 = vst [vmem:[#allocation10 + $0x18] sm:$0xff] 0.0
    $region21: #{tpu_custom_call.1} parent=1 // pred_fallthru
      _
    %v68 = vld [vmem:[#allocation2] sm:$0xff]
    %v69 = vld [vmem:[#allocation2 + $0x8] sm:$0xff]
    %v70 = vld [vmem:[#allocation5] sm:$0xff]
    %v71 = vld [vmem:[#allocation5 + $0x8] sm:$0xff]
    %v72 = vmul.f32 %v68, %v70
    %v73 = vmul.f32 %v69, %v71
    %v74 = vmul.f32 %v68, %v68
    %v75 = vmul.f32 %v69, %v69
    %v76 = vmul.f32 %v70, %v70
    %v77 = vmul.f32 %v71, %v71
    %v78 = vadd.f32 %v74, %v76
    %v79 = vadd.f32 %v75, %v77
    %v80 = vlog2.pop %v68
    %v81 = vmul.f32 %v80, 0.6931472
    %v82 = vlog2.pop %v69
    %v83 = vmul.f32 %v82, 0.6931472
    %v84 = vmax.f32 %v81, -100.0
    %v85 = vmax.f32 %v83, -100.0
    %v86 = vsub.f32 1.0, %v68
    %v87 = vsub.f32 1.0, %v69
    %v88 = vlog2.pop %v86
    %v89 = vmul.f32 %v88, 0.6931472
    %v90 = vlog2.pop %v87
    %v91 = vmul.f32 %v90, 0.6931472
    %v92 = vmax.f32 %v89, -100.0
    %v93 = vmax.f32 %v91, -100.0
    %v94 = vsub.f32 1.0, %v70
    %v95 = vsub.f32 1.0, %v71
    %v96 = vmul.f32 %v70, %v84
    %v97 = vmul.f32 %v71, %v85
    %v98 = vmul.f32 %v94, %v92
    %v99 = vmul.f32 %v95, %v93
    %v100 = vadd.f32 %v96, %v98
    %v101 = vadd.f32 %v97, %v99
    %vm102 = vcmp.gt.f32.partialorder %v70, 0.5
    %vm103 = vcmp.gt.f32.partialorder %v71, 0.5
    %v104 = vsel %vm102, 1, 0
    %v105 = vsel %vm103, 1, 0
    %v106 = vcvt.s32.f32 %v104
    %v107 = vcvt.s32.f32 %v105
    %vm108 = vcmp.lt.f32.partialorder %v70, 0.5
    %vm109 = vcmp.lt.f32.partialorder %v71, 0.5
    %v110 = vsel %vm108, 1, 0
    %v111 = vsel %vm109, 1, 0
    %v112 = vcvt.s32.f32 %v110
    %v113 = vcvt.s32.f32 %v111
    %v114 = vmul.f32 %v106, %v100
    %v115 = vmul.f32 %v107, %v101
    %v116 = vmul.f32 %v112, %v100
    %v117 = vmul.f32 %v113, %v101
    %v118 = vld [vmem:[#allocation7] sm:$0xff]
    %v119 = vld [vmem:[#allocation7 + $0x8] sm:$0xff]
    %v120 = vadd.f32 %v72, 0.0
    %v121 = vadd.f32 %v73, 0.0
    %v122 = vadd.f32 %v118, %v120
    %v123 = vadd.f32 %v119, %v121
    %124 = vst [vmem:[#allocation7] sm:$0xff] %v122
    %125 = vst [vmem:[#allocation7 + $0x8] sm:$0xff] %v123
    %v126 = vld [vmem:[#allocation8] sm:$0xff]
    %v127 = vld [vmem:[#allocation8 + $0x8] sm:$0xff]
    %v128 = vadd.f32 %v78, 0.0
    %v129 = vadd.f32 %v79, 0.0
    %v130 = vadd.f32 %v126, %v128
    %v131 = vadd.f32 %v127, %v129
    %132 = vst [vmem:[#allocation8] sm:$0xff] %v130
    %133 = vst [vmem:[#allocation8 + $0x8] sm:$0xff] %v131
    %v134 = vld [vmem:[#allocation10] sm:$0xff]
    %v135 = vadd.f32 %v106, %v107
    %v136 = vadd.f32 %v134, %v135
    %137 = vst [vmem:[#allocation10] sm:$0xff] %v136
    %s138 = scalar_lea.vmem [#allocation10], 8
    %v139 = vld [vmem:[%s138] sm:$0xff]
    %v140 = vadd.f32 %v112, %v113
    %v141 = vadd.f32 %v139, %v140
    %142 = vst [vmem:[%s138] sm:$0xff] %v141
    %s143 = scalar_lea.vmem [#allocation10], 16
    %v144 = vld [vmem:[%s143] sm:$0xff]
    %v145 = vadd.f32 %v114, %v115
    %v146 = vadd.f32 %v144, %v145
    %147 = vst [vmem:[%s143] sm:$0xff] %v146
    %s148 = scalar_lea.vmem [#allocation10], 24
    %v149 = vld [vmem:[%s148] sm:$0xff]
    %v150 = vadd.f32 %v116, %v117
    %v151 = vadd.f32 %v149, %v150
    %152 = vst [vmem:[%s148] sm:$0xff] %v151
    // Predicated region
    $region22: #{tpu_custom_call.1} parent=1 // pred_check
      _
    $region23: #{tpu_custom_call.1} parent=1 // pred_check_branch
      %154 = sbr.rel (0) target = $region25
    $region24: #{tpu_custom_call.1} parent=1 // pred_region
      %156 = vsyncadd [#allocation4], 0
      %s157 = sshll.u32 [#allocation7], 4
      %s158 = int_to_ptr.vmem [resolvable:$true] %s157
      %s159 = sshll.u32 %s2, 4
      %s160 = int_to_ptr.hbm [resolvable:$true] %s159
      %165 = dma.vmem_to_hbm [thread:$0]  %s158, 256, %s160, [#allocation4], 128, 128, 8
    $region25: #{tpu_custom_call.1} parent=1 // pred_fallthru
      _
    // Predicated region
    $region26: #{tpu_custom_call.1} parent=1 // pred_check
      _
    $region27: #{tpu_custom_call.1} parent=1 // pred_check_branch
      %167 = sbr.rel (0) target = $region29
    $region28: #{tpu_custom_call.1} parent=1 // pred_region
      %169 = vsyncadd [#allocation9], 0
      %s170 = sshll.u32 [#allocation8], 4
      %s171 = int_to_ptr.vmem [resolvable:$true] %s170
      %s172 = sshll.u32 %s3, 4
      %s173 = int_to_ptr.hbm [resolvable:$true] %s172
      %178 = dma.vmem_to_hbm [thread:$0]  %s171, 256, %s173, [#allocation9], 128, 128, 8
    $region29: #{tpu_custom_call.1} parent=1 // pred_fallthru
      _
    // Predicated region
    $region30: #{tpu_custom_call.1} parent=1 // pred_check
      _
    $region31: #{tpu_custom_call.1} parent=1 // pred_check_branch
      %180 = sbr.rel (0) target = $region33
    $region32: #{tpu_custom_call.1} parent=1 // pred_region
      %182 = vsyncadd [#allocation9], 0
      %s183 = sshll.u32 [#allocation10], 4
      %s184 = int_to_ptr.vmem [resolvable:$true] %s183
      %s185 = sshll.u32 %s4, 4
      %s186 = int_to_ptr.hbm [resolvable:$true] %s185
      %191 = dma.vmem_to_hbm [thread:$0]  %s184, 512, %s186, [#allocation9], 128, 128, 8
    $region33: #{tpu_custom_call.1} parent=1 // pred_fallthru
      _
    // Predicated region
    $region34: #{tpu_custom_call.1} parent=1 // pred_check
      _
    $region35: #{tpu_custom_call.1} parent=1 // pred_check_branch
      %193 = sbr.rel (0) target = $region37
    $region36: #{tpu_custom_call.1} parent=1 // pred_region
      %195 = dma.done [#allocation4], 256
    $region37: #{tpu_custom_call.1} parent=1 // pred_fallthru
      _
    // Predicated region
    $region38: #{tpu_custom_call.1} parent=1 // pred_check
      _
    $region39: #{tpu_custom_call.1} parent=1 // pred_check_branch
      %197 = sbr.rel (0) target = $region41
    $region40: #{tpu_custom_call.1} parent=1 // pred_region
      %199 = dma.done [#allocation9], 256
    $region41: #{tpu_custom_call.1} parent=1 // pred_fallthru
      _
    // Predicated region
    $region42: #{tpu_custom_call.1} parent=1 // pred_check
      _
    $region43: #{tpu_custom_call.1} parent=1 // pred_check_branch
      %201 = sbr.rel (0) target = $region45
    $region44: #{tpu_custom_call.1} parent=1 // pred_region
      %203 = dma.done [#allocation9], 512
    $region45: #{tpu_custom_call.1} parent=1 // pred_fallthru
      _
    %204 = vsyncpa [#allocation3], 1
    %205 = vsyncpa [#allocation6], 1
    %206 = vsyncpa [#allocation4], 1
    %207 = vsyncpa [#allocation9], 1

</llo_original>
